<compile_context>
chip_gen: v6e
topology: v6e:2x2x1
jax: 0.10.0
libtpu: 0.0.40
codegen_flags: <defaults>
</compile_context>

<pallas_src>
import jax
import jax.numpy as jnp
from jax.experimental import pallas as pl
from jax.experimental.pallas import tpu as pltpu


# ----------------------------------------------------------------------------
# Fused Residual(WeightStandardizedConv3d(C, C, kernel_size=1)) kernel.
# ----------------------------------------------------------------------------
def _residual_wsconv_kernel(x_ref, w_ref, b_ref, o_ref):
    # x_ref: (C, TS)  channels-first activation tile (lane axis = spatial)
    # w_ref: (C, C)   pre-standardized conv weight (out_ch, in_ch), resident
    # b_ref: (C, 1)   bias, resident
    # o_ref: (C, TS)  output tile = x + (w @ x + b)
    x = x_ref[...].astype(jnp.float32)
    y = jnp.dot(w_ref[...], x, preferred_element_type=jnp.float32)
    o_ref[...] = (x + y + b_ref[...]).astype(o_ref.dtype)


def _pick_spatial_tile(S, max_ts=2048):
    """Largest multiple of 128 <= max_ts that divides S (falls back to S)."""
    if S % 128 != 0:
        return S                       # full-extent block is always legal
    ts = min(max_ts, S)
    ts -= ts % 128
    while S % ts != 0:
        ts -= 128
    return ts


def residual_ws_pointwise_conv(x, weight, bias, *, max_ts=2048):
    """Residual wrapping a weight-standardized 1x1x1 Conv3d (out_ch == in_ch).

    x:      (B, C, H, W, D)  channels-first (PyTorch layout)
    weight: (C, C, 1, 1, 1)  Conv3d weight
    bias:   (C,)
    returns (B, C, H, W, D)  == x + conv_ws(x)
    """
    B, C, H, W, D = x.shape
    O = weight.shape[0]
    assert O == C, "residual add requires out_channels == in_channels"
    S = H * W * D
    x3 = x.reshape(B, C, S)            # free reshape, no transpose / no HBM copy

    # Weight standardization hoisted out of the kernel (done once, not per tile).
    eps = 1e-5 if x.dtype == jnp.float32 else 1e-3
    wm = weight.reshape(C, C).astype(jnp.float32)
    mean = jnp.mean(wm, axis=1, keepdims=True)
    var = jnp.mean((wm - mean) ** 2, axis=1, keepdims=True)   # unbiased=False
    w_norm = (wm - mean) * jax.lax.rsqrt(var + eps)
    b2 = bias.astype(jnp.float32).reshape(C, 1)

    ts = _pick_spatial_tile(S, max_ts=max_ts)
    grid = (B, S // ts) if S % ts == 0 else (B, pl.cdiv(S, ts))

    out = pl.pallas_call(
        _residual_wsconv_kernel,
        out_shape=jax.ShapeDtypeStruct((B, C, S), x.dtype),
        grid_spec=pltpu.PrefetchScalarGridSpec(
            num_scalar_prefetch=0,
            grid=grid,
            in_specs=[
                pl.BlockSpec((None, C, ts), lambda b, s: (b, 0, s)),  # activation
                pl.BlockSpec((C, C), lambda b, s: (0, 0)),            # weight
                pl.BlockSpec((C, 1), lambda b, s: (0, 0)),            # bias
            ],
            out_specs=pl.BlockSpec((None, C, ts), lambda b, s: (b, 0, s)),
        ),
        compiler_params=pltpu.CompilerParams(
            dimension_semantics=("parallel", "parallel"),
        ),
    )(x3, w_norm, b2)

    return out.reshape(B, C, H, W, D)


# ----------------------------------------------------------------------------
# Generic Residual(func) for an arbitrary JAX callable `func`.
# ----------------------------------------------------------------------------
def _residual_add_kernel(x_ref, y_ref, o_ref):
    o_ref[...] = x_ref[...] + y_ref[...]


def residual_forward(image, func, *, max_rows=2048):
    """General Residual: image + func(image); the add is a tiled Pallas kernel."""
    y = func(image)
    assert y.shape == image.shape and y.dtype == image.dtype
    total = image.size
    if total % 128 != 0:
        # TODO(synk): ragged (non multiple-of-128) element counts fall back to XLA.
        return image + y

    rows = total // 128
    a = image.reshape(rows, 128)
    b = y.reshape(rows, 128)

    if rows % 8 == 0:
        tr = min(max_rows, rows)
        if rows >= 16:
            tr = min(tr, rows // 2)    # keep >=2 grid steps (v7x has 2 TCs)
        tr -= tr % 8
        while rows % tr != 0:
            tr -= 8
    else:
        tr = rows                      # full-extent block

    out = pl.pallas_call(
        _residual_add_kernel,
        out_shape=jax.ShapeDtypeStruct((rows, 128), image.dtype),
        grid_spec=pltpu.PrefetchScalarGridSpec(
            num_scalar_prefetch=0,
            grid=(rows // tr,),
            in_specs=[
                pl.BlockSpec((tr, 128), lambda i: (i, 0)),
                pl.BlockSpec((tr, 128), lambda i: (i, 0)),
            ],
            out_specs=pl.BlockSpec((tr, 128), lambda i: (i, 0)),
        ),
        compiler_params=pltpu.CompilerParams(
            dimension_semantics=("parallel",),
        ),
    )(a, b)
    return out.reshape(image.shape)


# ----------------------------------------------------------------------------
# Pure-JAX references.
# ----------------------------------------------------------------------------
def _reference_residual_wsconv(x, weight, bias):
    B, C, H, W, D = x.shape
    wm = weight.reshape(C, C)
    mean = wm.mean(axis=1, keepdims=True)
    var = ((wm - mean) ** 2).mean(axis=1, keepdims=True)
    eps = 1e-5 if x.dtype == jnp.float32 else 1e-3
    wn = (wm - mean) * jax.lax.rsqrt(var + eps)
    y = jnp.einsum('oc,bchwd->bohwd', wn, x) + bias[None, :, None, None, None]
    return x + y


if __name__ == "__main__":
    key = jax.random.PRNGKey(0)
    k_x, k_w, k_b = jax.random.split(key, 3)

    B, C, H, W, D = 2, 8, 16, 16, 16
    x = jax.random.normal(k_x, (B, C, H, W, D), dtype=jnp.float32)
    # Deterministic synthetic Conv3d(C, C, kernel_size=1) parameters.
    weight = jax.random.normal(k_w, (C, C, 1, 1, 1), dtype=jnp.float32) * 0.1
    bias = jax.random.normal(k_b, (C,), dtype=jnp.float32) * 0.1

    # 1) Fused Residual(weight-standardized 1x1x1 conv).
    out = residual_ws_pointwise_conv(x, weight, bias)
    out = jax.block_until_ready(out)
    ref = _reference_residual_wsconv(x, weight, bias)
    assert out.shape == x.shape, out.shape
    assert jnp.allclose(out, ref, atol=1e-4, rtol=1e-4), float(jnp.abs(out - ref).max())

    # 2) Generic Residual(func) with an arbitrary JAX callable.
    func = lambda t: 0.5 * jnp.tanh(t)
    out2 = residual_forward(x, func)
    out2 = jax.block_until_ready(out2)
    ref2 = x + func(x)
    assert jnp.allclose(out2, ref2, atol=1e-5, rtol=1e-5), float(jnp.abs(out2 - ref2).max())

    print("KERNEL_OK")
</pallas_src>

<mosaic_0001>
module attributes {stable_mosaic.version = 11 : i64} {
  func.func @_residual_wsconv_kernel(%arg0: i32, %arg1: i32, %arg2: memref<1x8x2048xf32, #tpu.memory_space<vmem>>, %arg3: memref<8x8xf32, #tpu.memory_space<vmem>>, %arg4: memref<8x1xf32, #tpu.memory_space<vmem>>, %arg5: memref<1x8x2048xf32, #tpu.memory_space<vmem>>) attributes {dimension_semantics = [#tpu.dimension_semantics<parallel>, #tpu.dimension_semantics<parallel>], iteration_bounds = array<i64: 2, 2>, scalar_prefetch = 0 : i64, scratch_operands = 0 : i64, tpu.core_type = #tpu.core_type<tc>, window_params = [{transform_indices = @transform_0, window_bounds = array<i64: 1, 8, 2048>}, {pipeline_mode = #tpu.pipeline_mode<synchronous>, transform_indices = @transform_1, window_bounds = array<i64: 8, 8>}, {pipeline_mode = #tpu.pipeline_mode<synchronous>, transform_indices = @transform_2, window_bounds = array<i64: 8, 1>}, {transform_indices = @transform_3, window_bounds = array<i64: 1, 8, 2048>}]} {
    %c0 = arith.constant 0 : index
    %c0_0 = arith.constant 0 : index
    %c0_1 = arith.constant 0 : index
    %0 = vector.load %arg2[%c0, %c0_0, %c0_1] : memref<1x8x2048xf32, #tpu.memory_space<vmem>>, vector<1x8x2048xf32>
    %1 = vector.shape_cast %0 : vector<1x8x2048xf32> to vector<8x2048xf32>
    %c0_2 = arith.constant 0 : index
    %c0_3 = arith.constant 0 : index
    %2 = vector.load %arg3[%c0_2, %c0_3] : memref<8x8xf32, #tpu.memory_space<vmem>>, vector<8x8xf32>
    %cst = arith.constant dense<0.000000e+00> : vector<8x2048xf32>
    %3 = tpu.matmul %2, %1, %cst {dimension_numbers = #tpu.dot_dimension_numbers<[1], [0], [0], [1], [0, 0, 1, 1], [], []>} : vector<8x8xf32>, vector<8x2048xf32>, vector<8x2048xf32> -> vector<8x2048xf32>
    %4 = arith.addf %1, %3 : vector<8x2048xf32>
    %c0_4 = arith.constant 0 : index
    %c0_5 = arith.constant 0 : index
    %5 = vector.load %arg4[%c0_4, %c0_5] : memref<8x1xf32, #tpu.memory_space<vmem>>, vector<8x1xf32>
    %6 = vector.broadcast %5 : vector<8x1xf32> to vector<8x2048xf32>
    %7 = arith.addf %4, %6 : vector<8x2048xf32>
    %c0_6 = arith.constant 0 : index
    %c0_7 = arith.constant 0 : index
    %c0_8 = arith.constant 0 : index
    %8 = vector.load %arg5[%c0_6, %c0_7, %c0_8] : memref<1x8x2048xf32, #tpu.memory_space<vmem>>, vector<1x8x2048xf32>
    %9 = vector.shape_cast %8 : vector<1x8x2048xf32> to vector<8x2048xf32>
    %10 = vector.shape_cast %7 : vector<8x2048xf32> to vector<1x8x2048xf32>
    tpu.vector_store %arg5[%c0_6, %c0_7, %c0_8], %10 {strides = array<i32>} : memref<1x8x2048xf32, #tpu.memory_space<vmem>>, vector<1x8x2048xf32>,
    return
  }
  func.func @transform_0(%arg0: i32, %arg1: i32) -> (i32, i32, i32) {
    %c0_i32 = arith.constant 0 : i32
    %c0_i32_0 = arith.constant 0 : i32
    return %arg0, %c0_i32, %arg1 : i32, i32, i32
  }
  func.func @transform_1(%arg0: i32, %arg1: i32) -> (i32, i32) {
    %c0_i32 = arith.constant 0 : i32
    %c0_i32_0 = arith.constant 0 : i32
    %c0_i32_1 = arith.constant 0 : i32
    return %c0_i32, %c0_i32_0 : i32, i32
  }
  func.func @transform_2(%arg0: i32, %arg1: i32) -> (i32, i32) {
    %c0_i32 = arith.constant 0 : i32
    %c0_i32_0 = arith.constant 0 : i32
    %c0_i32_1 = arith.constant 0 : i32
    return %c0_i32, %c0_i32_0 : i32, i32
  }
  func.func @transform_3(%arg0: i32, %arg1: i32) -> (i32, i32, i32) {
    %c0_i32 = arith.constant 0 : i32
    %c0_i32_0 = arith.constant 0 : i32
    return %arg0, %c0_i32, %arg1 : i32, i32, i32
  }
}

</mosaic_0001>

<llo_original>
// kernel: tpu_custom_call.1
$region0: #{tpu_custom_call.1}
  #allocation0 [shape = 'u32[]', space=smem, size = 0x4, offset = 0x4, fixed_abs, tag = 'smem constant byte address 0x4 - core index']
  #allocation1 [shape = 'u32[144,128]{1,0:T(1,128)}', space=vmem, size = 0x12000, scoped, tag = 'internal scratch']
  %s0 = inlined_call_operand.hbm [shape: f32[2,8,4096], index: 0, kind: input, shape index: {}]
  %s1 = inlined_call_operand.vmem [shape: f32[8,8], index: 1, kind: input, shape index: {}]
  %s2 = inlined_call_operand.vmem [shape: f32[8,1], index: 2, kind: input, shape index: {}]
  %s3 = inlined_call_operand.hbm [shape: f32[2,8,4096], index: 3, kind: output, shape index: {}]
  %s4 = sld [smem:[#allocation0]]
  $region49: #{tpu_custom_call.1} parent=0
    _
  %s6 = ssub.s32 1, %s4
  %s7 = scalar_select 0, %s6, %s4
  $region1: #{tpu_custom_call.1} parent=0
    #allocation2 [shape = 'u8[131072]{0}', space=vmem, size = 0x20000, scoped, tag = 'input window, operand 0']
    #allocation3 [shape = 's32[2]{0}', space=sflag, size = 0x8, scoped, tag = 'scoped memory for tpu_custom_call.1']
    #allocation4 [shape = 's32[2]{0}', space=sflag, size = 0x8, scoped, tag = 'scoped memory for tpu_custom_call.1']
    #allocation5 [shape = 'u8[131072]{0}', space=vmem, size = 0x20000, scoped, tag = 'output window, operand 0']
    %8 = vsyncpa [#allocation3], 0
    %s9 = scalar_lea.sflag [#allocation3], 1
    %10 = vsyncpa %s9, 0
    %11 = vsyncpa [#allocation4], 0
    %s12 = scalar_lea.sflag [#allocation4], 1
    %13 = vsyncpa %s12, 0
    loop: start=0, step=1, limit=6
    $region2: #{tpu_custom_call.1} parent=1 // loop_pre_header
      _
    $region3: #{tpu_custom_call.1} parent=1 // loop_header
      %s15 = sphi 0, %s19
      %p16 = scmp.ge.s32.totalorder %s15, 6
      %s22 = sphi 0, %s34
      %s23 = sphi 0, %s30
      %s24 = sphi 0, %s22
      %s25 = sphi 0, %s23
      %s26 = sphi 0, %s24
      %s27 = sphi 0, %s25
      %s39 = sphi 0, %s41
      %s42 = sphi 0, %s39
      %s43 = sphi 0, %s42
      %s59 = sphi 0, %s43
      %s63 = sphi 0, %s63
      %s65 = sphi 0, %s63
      %s66 = sphi 0, %s65
      %s80 = sphi 0, %s66
      %s84 = sphi 0, %s84
      %s86 = sphi 0, %s84
      %s87 = sphi 0, %s86
      %s101 = sphi 0, %s87
      %s109 = sphi 0, %s111
      %s112 = sphi 0, %s109
      %s113 = sphi 0, %s112
      %s129 = sphi 0, %s113
    $region4: #{tpu_custom_call.1} parent=1 // loop_header_branch
      %18 = sbr.rel (%p16) target = $region8
    $region5: #{tpu_custom_call.1} parent=1 // loop_body
      %s20 = ssub.s32 %s15, 1
      %s21 = ssub.s32 %s15, 2
      %s28 = sadd.s32 1, %s23
      %p29 = scmp.ge.s32.totalorder %s28, 2
      %s30 = scalar_select %p29, 0, %s28
      %s31 = sadd.s32 1, %s22
      %s32 = scalar_select %p29, %s31, %s22
      %p33 = scmp.ge.s32.totalorder %s32, 2
      %s34 = scalar_select %p33, 0, %s32
      %s35 = ssub.s32 %s22, %s34
      %s36 = ssub.s32 %s23, %s30
      %s37 = sor.u32 %s35, %s36
      %p38 = scmp.eq.s32.totalorder %s37, 0
      %s40 = sadd.s32 %s39, 1
      %s41 = scalar_select %p38, %s39, %s40
      %p44 = pneg %p38
      %p45 = scmp.eq.s32.totalorder %s15, 3
      %p46 = por %p44, %p45
      %p47 = scmp.ne.s32.totalorder %s39, %s42
      %p48 = scmp.eq.s32.totalorder %s15, 0
      %p49 = por %p47, %p48
      %p50 = scmp.ne.s32.totalorder %s39, %s42
      %p51 = scmp.eq.s32.totalorder %s20, 3
      %p52 = por %p50, %p51
      %p53 = scmp.ne.s32.totalorder %s42, %s43
      %p54 = scmp.eq.s32.totalorder %s20, 0
      %p55 = por %p53, %p54
      %p56 = scmp.ne.s32.totalorder %s42, %s43
      %p57 = scmp.eq.s32.totalorder %s21, 3
      %p58 = por %p56, %p57
      %p60 = scmp.ne.s32.totalorder %s43, %s59
      %p61 = scmp.eq.s32.totalorder %s21, 0
      %p62 = por %p60, %p61
      %s64 = sadd.s32 %s63, 1
      %p67 = scmp.eq.s32.totalorder %s15, 3
      %p68 = scmp.ne.s32.totalorder %s63, %s65
      %p69 = scmp.eq.s32.totalorder %s15, 0
      %p70 = por %p68, %p69
      %p71 = scmp.ne.s32.totalorder %s63, %s65
      %p72 = scmp.eq.s32.totalorder %s20, 3
      %p73 = por %p71, %p72
      %p74 = scmp.ne.s32.totalorder %s65, %s66
      %p75 = scmp.eq.s32.totalorder %s20, 0
      %p76 = por %p74, %p75
      %p77 = scmp.ne.s32.totalorder %s65, %s66
      %p78 = scmp.eq.s32.totalorder %s21, 3
      %p79 = por %p77, %p78
      %p81 = scmp.ne.s32.totalorder %s66, %s80
      %p82 = scmp.eq.s32.totalorder %s21, 0
      %p83 = por %p81, %p82
      %s85 = sadd.s32 %s84, 1
      %p88 = scmp.eq.s32.totalorder %s15, 3
      %p89 = scmp.ne.s32.totalorder %s84, %s86
      %p90 = scmp.eq.s32.totalorder %s15, 0
      %p91 = por %p89, %p90
      %p92 = scmp.ne.s32.totalorder %s84, %s86
      %p93 = scmp.eq.s32.totalorder %s20, 3
      %p94 = por %p92, %p93
      %p95 = scmp.ne.s32.totalorder %s86, %s87
      %p96 = scmp.eq.s32.totalorder %s20, 0
      %p97 = por %p95, %p96
      %p98 = scmp.ne.s32.totalorder %s86, %s87
      %p99 = scmp.eq.s32.totalorder %s21, 3
      %p100 = por %p98, %p99
      %p102 = scmp.ne.s32.totalorder %s87, %s101
      %p103 = scmp.eq.s32.totalorder %s21, 0
      %p104 = por %p102, %p103
      %s105 = ssub.s32 %s22, %s34
      %s106 = ssub.s32 %s23, %s30
      %s107 = sor.u32 %s105, %s106
      %p108 = scmp.eq.s32.totalorder %s107, 0
      %s110 = sadd.s32 %s109, 1
      %s111 = scalar_select %p108, %s109, %s110
      %p114 = pneg %p108
      %p115 = scmp.eq.s32.totalorder %s15, 3
      %p116 = por %p114, %p115
      %p117 = scmp.ne.s32.totalorder %s109, %s112
      %p118 = scmp.eq.s32.totalorder %s15, 0
      %p119 = por %p117, %p118
      %p120 = scmp.ne.s32.totalorder %s109, %s112
      %p121 = scmp.eq.s32.totalorder %s20, 3
      %p122 = por %p120, %p121
      %p123 = scmp.ne.s32.totalorder %s112, %s113
      %p124 = scmp.eq.s32.totalorder %s20, 0
      %p125 = por %p123, %p124
      %p126 = scmp.ne.s32.totalorder %s112, %s113
      %p127 = scmp.eq.s32.totalorder %s21, 3
      %p128 = por %p126, %p127
      %p130 = scmp.ne.s32.totalorder %s113, %s129
      %p131 = scmp.eq.s32.totalorder %s21, 0
      %p132 = por %p130, %p131
      %p133 = scmp.le.s32.totalorder 1, %s15
      %p134 = scmp.lt.s32.totalorder %s15, 5
      %p135 = pnand %p133, %p134
      %p136 = pneg %p135
      // Predicated region
      $region9: #{tpu_custom_call.1} parent=5 // pred_check
        _
      $region10: #{tpu_custom_call.1} parent=5 // pred_check_branch
        %138 = sbr.rel (%p135) target = $region12
      $region11: #{tpu_custom_call.1} parent=5 // pred_region
        %s139 = ssub.s32 %s15, 1
        // Predicated region
        $region13: #{tpu_custom_call.1} parent=11 // pred_check
          %p140 = pneg %p76
        $region14: #{tpu_custom_call.1} parent=11 // pred_check_branch
          %142 = sbr.rel (%p140) target = $region16
        $region15: #{tpu_custom_call.1} parent=11 // pred_region
          _
        $region16: #{tpu_custom_call.1} parent=11 // pred_fallthru
          _
        // Predicated region
        $region17: #{tpu_custom_call.1} parent=11 // pred_check
          %p143 = pneg %p97
        $region18: #{tpu_custom_call.1} parent=11 // pred_check_branch
          %145 = sbr.rel (%p143) target = $region20
        $region19: #{tpu_custom_call.1} parent=11 // pred_region
          _
        $region20: #{tpu_custom_call.1} parent=11 // pred_fallthru
          _
      $region12: #{tpu_custom_call.1} parent=5 // pred_fallthru
        _
      %p146 = scmp.lt.s32.totalorder %s15, 4
      // Predicated region
      $region21: #{tpu_custom_call.1} parent=5 // pred_check
        %p147 = pneg %p146
      $region22: #{tpu_custom_call.1} parent=5 // pred_check_branch
        %149 = sbr.rel (%p147) target = $region24
      $region23: #{tpu_custom_call.1} parent=5 // pred_region
        // Predicated region
        $region25: #{tpu_custom_call.1} parent=23 // pred_check
          %p150 = pneg %p49
        $region26: #{tpu_custom_call.1} parent=23 // pred_check_branch
          %152 = sbr.rel (%p150) target = $region28
        $region27: #{tpu_custom_call.1} parent=23 // pred_region
          %s153 = sand.u32 %s39, 1
          %s154 = scalar_lea.sflag [#allocation3], %s153
          %s155 = sand.u32 %s39, 1
          %s156 = smul.addr %s155, 128
          %s157 = scalar_lea.vmem [#allocation2], %s156
          %s158 = smul.u32 16, %s23
          %s160 = ssub.s32 2048, 2048
          %161 = vsyncadd %s154, %s160
          %s162 = smul.addr %s22, 32
          %s163 = sadd.s32 %s158, %s162
          %s164 = smul.addr %s163, 128
          %s165 = scalar_lea.hbm %s0, %s164
          %s167 = sshll.u32 %s157, 4
          %s168 = int_to_ptr.vmem [resolvable:$true] %s167
          %170 = dma.hbm_to_vmem [thread:$0]  %s165, 2048, %s168, %s154
        $region28: #{tpu_custom_call.1} parent=23 // pred_fallthru
          _
      $region24: #{tpu_custom_call.1} parent=5 // pred_fallthru
        _
      %p171 = scmp.le.s32.totalorder 1, %s15
      %p172 = scmp.lt.s32.totalorder %s15, 5
      %p173 = pnand %p171, %p172
      %p174 = pneg %p173
      // Predicated region
      $region29: #{tpu_custom_call.1} parent=5 // pred_check
        _
      $region30: #{tpu_custom_call.1} parent=5 // pred_check_branch
        %176 = sbr.rel (%p173) target = $region32
      $region31: #{tpu_custom_call.1} parent=5 // pred_region
        %s177 = ssub.s32 %s15, 1
        %s178 = sand.u32 %s42, 1
        %s179 = scalar_lea.sflag [#allocation3], %s178
        %s180 = sand.u32 %s42, 1
        %s181 = smul.addr %s180, 128
        %s182 = scalar_lea.vmem [#allocation2], %s181
        // Predicated region
        $region33: #{tpu_custom_call.1} parent=31 // pred_check
          %p183 = pneg %p55
        $region34: #{tpu_custom_call.1} parent=31 // pred_check_branch
          %185 = sbr.rel (%p183) target = $region36
        $region35: #{tpu_custom_call.1} parent=31 // pred_region
          %186 = dma.done %s179, 2048
        $region36: #{tpu_custom_call.1} parent=31 // pred_fallthru
          _
        %s187 = sand.u32 %s42, 1
        %s188 = scalar_lea.sflag [#allocation3], %s187
        %s189 = sand.u32 %s42, 1
        %s190 = smul.addr %s189, 128
        %s191 = scalar_lea.vmem [#allocation2], %s190
        %p192 = pneg %p55
        %p193 = pneg %p52
        %p194 = pneg %p76
        %p195 = pneg %p73
        %p196 = pneg %p97
        %p197 = pneg %p94
        %p198 = pneg %p125
        %p199 = pneg %p122
        %s200 = sand.u32 %s112, 1
        %s201 = scalar_lea.sflag [#allocation4], %s200
        %s202 = sand.u32 %s112, 1
        %s203 = smul.addr %s202, 128
        %s204 = scalar_lea.vmem [#allocation5], %s203
        %s205 = smul.u32 16, %s25
        %s206 = smul.u32 16, %s25
        %v207 = vld [vmem:[%s182] sm:$0xff]
        %v208 = vld [vmem:[%s182 + $0x8] sm:$0xff]
        %v209 = vld [vmem:[%s182 + $0x10] sm:$0xff]
        %v210 = vld [vmem:[%s182 + $0x18] sm:$0xff]
        %v211 = vld [vmem:[%s182 + $0x20] sm:$0xff]
        %v212 = vld [vmem:[%s182 + $0x28] sm:$0xff]
        %v213 = vld [vmem:[%s182 + $0x30] sm:$0xff]
        %v214 = vld [vmem:[%s182 + $0x38] sm:$0xff]
        %v215 = vld [vmem:[%s182 + $0x40] sm:$0xff]
        %v216 = vld [vmem:[%s182 + $0x48] sm:$0xff]
        %v217 = vld [vmem:[%s182 + $0x50] sm:$0xff]
        %v218 = vld [vmem:[%s182 + $0x58] sm:$0xff]
        %v219 = vld [vmem:[%s182 + $0x60] sm:$0xff]
        %v220 = vld [vmem:[%s182 + $0x68] sm:$0xff]
        %v221 = vld [vmem:[%s182 + $0x70] sm:$0xff]
        %v222 = vld [vmem:[%s182 + $0x78] sm:$0xff]
        %v223 = vld [vmem:[%s1] sm:$0xff]
        %vm224 = vcmask 64512
        %v226 = vsel %vm224, %v223, 0
        %228 = vmatprep.subr.mxu0 0.0
        %229 = vmatpush1.msra.mxu0 0.0
        %230 = vmatprep.subr.mxu0 0.0
        %231 = vmatpush1.msra.mxu0 0.0
        %232 = vmatprep.subr.mxu0 0.0
        %233 = vmatpush1.msra.mxu0 0.0
        %234 = vmatprep.subr.mxu0 0.0
        %235 = vmatpush1.msra.mxu0 0.0
        %236 = vmatprep.subr.mxu0 0.0
        %237 = vmatpush1.msra.mxu0 0.0
        %238 = vmatprep.subr.mxu0 0.0
        %239 = vmatpush1.msra.mxu0 0.0
        %240 = vmatprep.subr.mxu0 0.0
        %241 = vmatpush1.msra.mxu0 0.0
        %242 = vmatprep.subr.mxu0 0.0
        %243 = vmatpush1.msra.mxu0 0.0
        %244 = vmatprep.subr.mxu0 0.0
        %245 = vmatpush1.msra.mxu0 0.0
        %246 = vmatprep.subr.mxu0 0.0
        %247 = vmatpush1.msra.mxu0 0.0
        %248 = vmatprep.subr.mxu0 0.0
        %249 = vmatpush1.msra.mxu0 0.0
        %250 = vmatprep.subr.mxu0 0.0
        %251 = vmatpush1.msra.mxu0 0.0
        %252 = vmatprep.subr.mxu0 0.0
        %253 = vmatpush1.msra.mxu0 0.0
        %254 = vmatprep.subr.mxu0 0.0
        %255 = vmatpush1.msra.mxu0 0.0
        %256 = vmatprep.subr.mxu0 0.0
        %257 = vmatpush1.msra.mxu0 0.0
        %258 = vmatprep.subr.mxu0 %v208
        %259 = vmatpush1.msra.mxu0 %v207
        %260 = vmatprep.subr.mxu0 0.0
        %261 = vmatpush2.msra.mxu0 0.0
        %262 = vmatprep.subr.mxu0 0.0
        %263 = vmatpush2.msra.mxu0 0.0
        %264 = vmatprep.subr.mxu0 0.0
        %265 = vmatpush2.msra.mxu0 0.0
        %266 = vmatprep.subr.mxu0 0.0
        %267 = vmatpush2.msra.mxu0 0.0
        %268 = vmatprep.subr.mxu0 0.0
        %269 = vmatpush2.msra.mxu0 0.0
        %270 = vmatprep.subr.mxu0 0.0
        %271 = vmatpush2.msra.mxu0 0.0
        %272 = vmatprep.subr.mxu0 0.0
        %273 = vmatpush2.msra.mxu0 0.0
        %274 = vmatprep.subr.mxu0 0.0
        %275 = vmatpush2.msra.mxu0 0.0
        %276 = vmatprep.subr.mxu0 0.0
        %277 = vmatpush2.msra.mxu0 0.0
        %278 = vmatprep.subr.mxu0 0.0
        %279 = vmatpush2.msra.mxu0 0.0
        %280 = vmatprep.subr.mxu0 0.0
        %281 = vmatpush2.msra.mxu0 0.0
        %282 = vmatprep.subr.mxu0 0.0
        %283 = vmatpush2.msra.mxu0 0.0
        %284 = vmatprep.subr.mxu0 0.0
        %285 = vmatpush2.msra.mxu0 0.0
        %286 = vmatprep.subr.mxu0 0.0
        %287 = vmatpush2.msra.mxu0 0.0
        %288 = vmatprep.subr.mxu0 0.0
        %289 = vmatpush2.msra.mxu0 0.0
        %290 = vmatprep.subr.mxu0 0.0
        %291 = vmatpush2.msra.mxu0 0.0
        %292 = vmatprep.mubr.f32.mxu0 0.0
        %293 = vmatmul.mubr.f32.gmra.mxu0 %v226
        %v294 = vpop.f32.mrf.mxu0
        %v295 = vadd.f32 0.0, %v294
        %v296 = vpop.f32.mrf.mxu0
        %v297 = vadd.f32 0.0, %v296
        %298 = vdwg.mxu0
        %299 = vmatprep.subr.mxu0 0.0
        %300 = vmatpush1.msra.mxu0 0.0
        %301 = vmatprep.subr.mxu0 0.0
        %302 = vmatpush1.msra.mxu0 0.0
        %303 = vmatprep.subr.mxu0 0.0
        %304 = vmatpush1.msra.mxu0 0.0
        %305 = vmatprep.subr.mxu0 0.0
        %306 = vmatpush1.msra.mxu0 0.0
        %307 = vmatprep.subr.mxu0 0.0
        %308 = vmatpush1.msra.mxu0 0.0
        %309 = vmatprep.subr.mxu0 0.0
        %310 = vmatpush1.msra.mxu0 0.0
        %311 = vmatprep.subr.mxu0 0.0
        %312 = vmatpush1.msra.mxu0 0.0
        %313 = vmatprep.subr.mxu0 0.0
        %314 = vmatpush1.msra.mxu0 0.0
        %315 = vmatprep.subr.mxu0 0.0
        %316 = vmatpush1.msra.mxu0 0.0
        %317 = vmatprep.subr.mxu0 0.0
        %318 = vmatpush1.msra.mxu0 0.0
        %319 = vmatprep.subr.mxu0 0.0
        %320 = vmatpush1.msra.mxu0 0.0
        %321 = vmatprep.subr.mxu0 0.0
        %322 = vmatpush1.msra.mxu0 0.0
        %323 = vmatprep.subr.mxu0 0.0
        %324 = vmatpush1.msra.mxu0 0.0
        %325 = vmatprep.subr.mxu0 0.0
        %326 = vmatpush1.msra.mxu0 0.0
        %327 = vmatprep.subr.mxu0 0.0
        %328 = vmatpush1.msra.mxu0 0.0
        %329 = vmatprep.subr.mxu0 %v210
        %330 = vmatpush1.msra.mxu0 %v209
        %331 = vmatprep.subr.mxu0 0.0
        %332 = vmatpush2.msra.mxu0 0.0
        %333 = vmatprep.subr.mxu0 0.0
        %334 = vmatpush2.msra.mxu0 0.0
        %335 = vmatprep.subr.mxu0 0.0
        %336 = vmatpush2.msra.mxu0 0.0
        %337 = vmatprep.subr.mxu0 0.0
        %338 = vmatpush2.msra.mxu0 0.0
        %339 = vmatprep.subr.mxu0 0.0
        %340 = vmatpush2.msra.mxu0 0.0
        %341 = vmatprep.subr.mxu0 0.0
        %342 = vmatpush2.msra.mxu0 0.0
        %343 = vmatprep.subr.mxu0 0.0
        %344 = vmatpush2.msra.mxu0 0.0
        %345 = vmatprep.subr.mxu0 0.0
        %346 = vmatpush2.msra.mxu0 0.0
        %347 = vmatprep.subr.mxu0 0.0
        %348 = vmatpush2.msra.mxu0 0.0
        %349 = vmatprep.subr.mxu0 0.0
        %350 = vmatpush2.msra.mxu0 0.0
        %351 = vmatprep.subr.mxu0 0.0
        %352 = vmatpush2.msra.mxu0 0.0
        %353 = vmatprep.subr.mxu0 0.0
        %354 = vmatpush2.msra.mxu0 0.0
        %355 = vmatprep.subr.mxu0 0.0
        %356 = vmatpush2.msra.mxu0 0.0
        %357 = vmatprep.subr.mxu0 0.0
        %358 = vmatpush2.msra.mxu0 0.0
        %359 = vmatprep.subr.mxu0 0.0
        %360 = vmatpush2.msra.mxu0 0.0
        %361 = vmatprep.subr.mxu0 0.0
        %362 = vmatpush2.msra.mxu0 0.0
        %363 = vmatprep.mubr.f32.mxu0 0.0
        %364 = vmatmul.mubr.f32.gmra.mxu0 %v226
        %v365 = vpop.f32.mrf.mxu0
        %v366 = vadd.f32 0.0, %v365
        %v367 = vpop.f32.mrf.mxu0
        %v368 = vadd.f32 0.0, %v367
        %369 = vdwg.mxu0
        %370 = vmatprep.subr.mxu0 0.0
        %371 = vmatpush1.msra.mxu0 0.0
        %372 = vmatprep.subr.mxu0 0.0
        %373 = vmatpush1.msra.mxu0 0.0
        %374 = vmatprep.subr.mxu0 0.0
        %375 = vmatpush1.msra.mxu0 0.0
        %376 = vmatprep.subr.mxu0 0.0
        %377 = vmatpush1.msra.mxu0 0.0
        %378 = vmatprep.subr.mxu0 0.0
        %379 = vmatpush1.msra.mxu0 0.0
        %380 = vmatprep.subr.mxu0 0.0
        %381 = vmatpush1.msra.mxu0 0.0
        %382 = vmatprep.subr.mxu0 0.0
        %383 = vmatpush1.msra.mxu0 0.0
        %384 = vmatprep.subr.mxu0 0.0
        %385 = vmatpush1.msra.mxu0 0.0
        %386 = vmatprep.subr.mxu0 0.0
        %387 = vmatpush1.msra.mxu0 0.0
        %388 = vmatprep.subr.mxu0 0.0
        %389 = vmatpush1.msra.mxu0 0.0
        %390 = vmatprep.subr.mxu0 0.0
        %391 = vmatpush1.msra.mxu0 0.0
        %392 = vmatprep.subr.mxu0 0.0
        %393 = vmatpush1.msra.mxu0 0.0
        %394 = vmatprep.subr.mxu0 0.0
        %395 = vmatpush1.msra.mxu0 0.0
        %396 = vmatprep.subr.mxu0 0.0
        %397 = vmatpush1.msra.mxu0 0.0
        %398 = vmatprep.subr.mxu0 0.0
        %399 = vmatpush1.msra.mxu0 0.0
        %400 = vmatprep.subr.mxu0 %v212
        %401 = vmatpush1.msra.mxu0 %v211
        %402 = vmatprep.subr.mxu0 0.0
        %403 = vmatpush2.msra.mxu0 0.0
        %404 = vmatprep.subr.mxu0 0.0
        %405 = vmatpush2.msra.mxu0 0.0
        %406 = vmatprep.subr.mxu0 0.0
        %407 = vmatpush2.msra.mxu0 0.0
        %408 = vmatprep.subr.mxu0 0.0
        %409 = vmatpush2.msra.mxu0 0.0
        %410 = vmatprep.subr.mxu0 0.0
        %411 = vmatpush2.msra.mxu0 0.0
        %412 = vmatprep.subr.mxu0 0.0
        %413 = vmatpush2.msra.mxu0 0.0
        %414 = vmatprep.subr.mxu0 0.0
        %415 = vmatpush2.msra.mxu0 0.0
        %416 = vmatprep.subr.mxu0 0.0
        %417 = vmatpush2.msra.mxu0 0.0
        %418 = vmatprep.subr.mxu0 0.0
        %419 = vmatpush2.msra.mxu0 0.0
        %420 = vmatprep.subr.mxu0 0.0
        %421 = vmatpush2.msra.mxu0 0.0
        %422 = vmatprep.subr.mxu0 0.0
        %423 = vmatpush2.msra.mxu0 0.0
        %424 = vmatprep.subr.mxu0 0.0
        %425 = vmatpush2.msra.mxu0 0.0
        %426 = vmatprep.subr.mxu0 0.0
        %427 = vmatpush2.msra.mxu0 0.0
        %428 = vmatprep.subr.mxu0 0.0
        %429 = vmatpush2.msra.mxu0 0.0
        %430 = vmatprep.subr.mxu0 0.0
        %431 = vmatpush2.msra.mxu0 0.0
        %432 = vmatprep.subr.mxu0 0.0
        %433 = vmatpush2.msra.mxu0 0.0
        %434 = vmatprep.mubr.f32.mxu0 0.0
        %435 = vmatmul.mubr.f32.gmra.mxu0 %v226
        %v436 = vpop.f32.mrf.mxu0
        %v437 = vadd.f32 0.0, %v436
        %v438 = vpop.f32.mrf.mxu0
        %v439 = vadd.f32 0.0, %v438
        %440 = vdwg.mxu0
        %441 = vmatprep.subr.mxu0 0.0
        %442 = vmatpush1.msra.mxu0 0.0
        %443 = vmatprep.subr.mxu0 0.0
        %444 = vmatpush1.msra.mxu0 0.0
        %445 = vmatprep.subr.mxu0 0.0
        %446 = vmatpush1.msra.mxu0 0.0
        %447 = vmatprep.subr.mxu0 0.0
        %448 = vmatpush1.msra.mxu0 0.0
        %449 = vmatprep.subr.mxu0 0.0
        %450 = vmatpush1.msra.mxu0 0.0
        %451 = vmatprep.subr.mxu0 0.0
        %452 = vmatpush1.msra.mxu0 0.0
        %453 = vmatprep.subr.mxu0 0.0
        %454 = vmatpush1.msra.mxu0 0.0
        %455 = vmatprep.subr.mxu0 0.0
        %456 = vmatpush1.msra.mxu0 0.0
        %457 = vmatprep.subr.mxu0 0.0
        %458 = vmatpush1.msra.mxu0 0.0
        %459 = vmatprep.subr.mxu0 0.0
        %460 = vmatpush1.msra.mxu0 0.0
        %461 = vmatprep.subr.mxu0 0.0
        %462 = vmatpush1.msra.mxu0 0.0
        %463 = vmatprep.subr.mxu0 0.0
        %464 = vmatpush1.msra.mxu0 0.0
        %465 = vmatprep.subr.mxu0 0.0
        %466 = vmatpush1.msra.mxu0 0.0
        %467 = vmatprep.subr.mxu0 0.0
        %468 = vmatpush1.msra.mxu0 0.0
        %469 = vmatprep.subr.mxu0 0.0
        %470 = vmatpush1.msra.mxu0 0.0
        %471 = vmatprep.subr.mxu0 %v214
        %472 = vmatpush1.msra.mxu0 %v213
        %473 = vmatprep.subr.mxu0 0.0
        %474 = vmatpush2.msra.mxu0 0.0
        %475 = vmatprep.subr.mxu0 0.0
        %476 = vmatpush2.msra.mxu0 0.0
        %477 = vmatprep.subr.mxu0 0.0
        %478 = vmatpush2.msra.mxu0 0.0
        %479 = vmatprep.subr.mxu0 0.0
        %480 = vmatpush2.msra.mxu0 0.0
        %481 = vmatprep.subr.mxu0 0.0
        %482 = vmatpush2.msra.mxu0 0.0
        %483 = vmatprep.subr.mxu0 0.0
        %484 = vmatpush2.msra.mxu0 0.0
        %485 = vmatprep.subr.mxu0 0.0
        %486 = vmatpush2.msra.mxu0 0.0
        %487 = vmatprep.subr.mxu0 0.0
        %488 = vmatpush2.msra.mxu0 0.0
        %489 = vmatprep.subr.mxu0 0.0
        %490 = vmatpush2.msra.mxu0 0.0
        %491 = vmatprep.subr.mxu0 0.0
        %492 = vmatpush2.msra.mxu0 0.0
        %493 = vmatprep.subr.mxu0 0.0
        %494 = vmatpush2.msra.mxu0 0.0
        %495 = vmatprep.subr.mxu0 0.0
        %496 = vmatpush2.msra.mxu0 0.0
        %497 = vmatprep.subr.mxu0 0.0
        %498 = vmatpush2.msra.mxu0 0.0
        %499 = vmatprep.subr.mxu0 0.0
        %500 = vmatpush2.msra.mxu0 0.0
        %501 = vmatprep.subr.mxu0 0.0
        %502 = vmatpush2.msra.mxu0 0.0
        %503 = vmatprep.subr.mxu0 0.0
        %504 = vmatpush2.msra.mxu0 0.0
        %505 = vmatprep.mubr.f32.mxu0 0.0
        %506 = vmatmul.mubr.f32.gmra.mxu0 %v226
        %v507 = vpop.f32.mrf.mxu0
        %v508 = vadd.f32 0.0, %v507
        %v509 = vpop.f32.mrf.mxu0
        %v510 = vadd.f32 0.0, %v509
        %511 = vdwg.mxu0
        %512 = vmatprep.subr.mxu0 0.0
        %513 = vmatpush1.msra.mxu0 0.0
        %514 = vmatprep.subr.mxu0 0.0
        %515 = vmatpush1.msra.mxu0 0.0
        %516 = vmatprep.subr.mxu0 0.0
        %517 = vmatpush1.msra.mxu0 0.0
        %518 = vmatprep.subr.mxu0 0.0
        %519 = vmatpush1.msra.mxu0 0.0
        %520 = vmatprep.subr.mxu0 0.0
        %521 = vmatpush1.msra.mxu0 0.0
        %522 = vmatprep.subr.mxu0 0.0
        %523 = vmatpush1.msra.mxu0 0.0
        %524 = vmatprep.subr.mxu0 0.0
        %525 = vmatpush1.msra.mxu0 0.0
        %526 = vmatprep.subr.mxu0 0.0
        %527 = vmatpush1.msra.mxu0 0.0
        %528 = vmatprep.subr.mxu0 0.0
        %529 = vmatpush1.msra.mxu0 0.0
        %530 = vmatprep.subr.mxu0 0.0
        %531 = vmatpush1.msra.mxu0 0.0
        %532 = vmatprep.subr.mxu0 0.0
        %533 = vmatpush1.msra.mxu0 0.0
        %534 = vmatprep.subr.mxu0 0.0
        %535 = vmatpush1.msra.mxu0 0.0
        %536 = vmatprep.subr.mxu0 0.0
        %537 = vmatpush1.msra.mxu0 0.0
        %538 = vmatprep.subr.mxu0 0.0
        %539 = vmatpush1.msra.mxu0 0.0
        %540 = vmatprep.subr.mxu0 0.0
        %541 = vmatpush1.msra.mxu0 0.0
        %542 = vmatprep.subr.mxu0 %v216
        %543 = vmatpush1.msra.mxu0 %v215
        %544 = vmatprep.subr.mxu0 0.0
        %545 = vmatpush2.msra.mxu0 0.0
        %546 = vmatprep.subr.mxu0 0.0
        %547 = vmatpush2.msra.mxu0 0.0
        %548 = vmatprep.subr.mxu0 0.0
        %549 = vmatpush2.msra.mxu0 0.0
        %550 = vmatprep.subr.mxu0 0.0
        %551 = vmatpush2.msra.mxu0 0.0
        %552 = vmatprep.subr.mxu0 0.0
        %553 = vmatpush2.msra.mxu0 0.0
        %554 = vmatprep.subr.mxu0 0.0
        %555 = vmatpush2.msra.mxu0 0.0
        %556 = vmatprep.subr.mxu0 0.0
        %557 = vmatpush2.msra.mxu0 0.0
        %558 = vmatprep.subr.mxu0 0.0
        %559 = vmatpush2.msra.mxu0 0.0
        %560 = vmatprep.subr.mxu0 0.0
        %561 = vmatpush2.msra.mxu0 0.0
        %562 = vmatprep.subr.mxu0 0.0
        %563 = vmatpush2.msra.mxu0 0.0
        %564 = vmatprep.subr.mxu0 0.0
        %565 = vmatpush2.msra.mxu0 0.0
        %566 = vmatprep.subr.mxu0 0.0
        %567 = vmatpush2.msra.mxu0 0.0
        %568 = vmatprep.subr.mxu0 0.0
        %569 = vmatpush2.msra.mxu0 0.0
        %570 = vmatprep.subr.mxu0 0.0
        %571 = vmatpush2.msra.mxu0 0.0
        %572 = vmatprep.subr.mxu0 0.0
        %573 = vmatpush2.msra.mxu0 0.0
        %574 = vmatprep.subr.mxu0 0.0
        %575 = vmatpush2.msra.mxu0 0.0
        %576 = vmatprep.mubr.f32.mxu0 0.0
        %577 = vmatmul.mubr.f32.gmra.mxu0 %v226
        %v578 = vpop.f32.mrf.mxu0
        %v579 = vadd.f32 0.0, %v578
        %v580 = vpop.f32.mrf.mxu0
        %v581 = vadd.f32 0.0, %v580
        %582 = vdwg.mxu0
        %583 = vmatprep.subr.mxu0 0.0
        %584 = vmatpush1.msra.mxu0 0.0
        %585 = vmatprep.subr.mxu0 0.0
        %586 = vmatpush1.msra.mxu0 0.0
        %587 = vmatprep.subr.mxu0 0.0
        %588 = vmatpush1.msra.mxu0 0.0
        %589 = vmatprep.subr.mxu0 0.0
        %590 = vmatpush1.msra.mxu0 0.0
        %591 = vmatprep.subr.mxu0 0.0
        %592 = vmatpush1.msra.mxu0 0.0
        %593 = vmatprep.subr.mxu0 0.0
        %594 = vmatpush1.msra.mxu0 0.0
        %595 = vmatprep.subr.mxu0 0.0
        %596 = vmatpush1.msra.mxu0 0.0
        %597 = vmatprep.subr.mxu0 0.0
        %598 = vmatpush1.msra.mxu0 0.0
        %599 = vmatprep.subr.mxu0 0.0
        %600 = vmatpush1.msra.mxu0 0.0
        %601 = vmatprep.subr.mxu0 0.0
        %602 = vmatpush1.msra.mxu0 0.0
        %603 = vmatprep.subr.mxu0 0.0
        %604 = vmatpush1.msra.mxu0 0.0
        %605 = vmatprep.subr.mxu0 0.0
        %606 = vmatpush1.msra.mxu0 0.0
        %607 = vmatprep.subr.mxu0 0.0
        %608 = vmatpush1.msra.mxu0 0.0
        %609 = vmatprep.subr.mxu0 0.0
        %610 = vmatpush1.msra.mxu0 0.0
        %611 = vmatprep.subr.mxu0 0.0
        %612 = vmatpush1.msra.mxu0 0.0
        %613 = vmatprep.subr.mxu0 %v218
        %614 = vmatpush1.msra.mxu0 %v217
        %615 = vmatprep.subr.mxu0 0.0
        %616 = vmatpush2.msra.mxu0 0.0
        %617 = vmatprep.subr.mxu0 0.0
        %618 = vmatpush2.msra.mxu0 0.0
        %619 = vmatprep.subr.mxu0 0.0
        %620 = vmatpush2.msra.mxu0 0.0
        %621 = vmatprep.subr.mxu0 0.0
        %622 = vmatpush2.msra.mxu0 0.0
        %623 = vmatprep.subr.mxu0 0.0
        %624 = vmatpush2.msra.mxu0 0.0
        %625 = vmatprep.subr.mxu0 0.0
        %626 = vmatpush2.msra.mxu0 0.0
        %627 = vmatprep.subr.mxu0 0.0
        %628 = vmatpush2.msra.mxu0 0.0
        %629 = vmatprep.subr.mxu0 0.0
        %630 = vmatpush2.msra.mxu0 0.0
        %631 = vmatprep.subr.mxu0 0.0
        %632 = vmatpush2.msra.mxu0 0.0
        %633 = vmatprep.subr.mxu0 0.0
        %634 = vmatpush2.msra.mxu0 0.0
        %635 = vmatprep.subr.mxu0 0.0
        %636 = vmatpush2.msra.mxu0 0.0
        %637 = vmatprep.subr.mxu0 0.0
        %638 = vmatpush2.msra.mxu0 0.0
        %639 = vmatprep.subr.mxu0 0.0
        %640 = vmatpush2.msra.mxu0 0.0
        %641 = vmatprep.subr.mxu0 0.0
        %642 = vmatpush2.msra.mxu0 0.0
        %643 = vmatprep.subr.mxu0 0.0
        %644 = vmatpush2.msra.mxu0 0.0
        %645 = vmatprep.subr.mxu0 0.0
        %646 = vmatpush2.msra.mxu0 0.0
        %647 = vmatprep.mubr.f32.mxu0 0.0
        %648 = vmatmul.mubr.f32.gmra.mxu0 %v226
        %v649 = vpop.f32.mrf.mxu0
        %v650 = vadd.f32 0.0, %v649
        %v651 = vpop.f32.mrf.mxu0
        %v652 = vadd.f32 0.0, %v651
        %653 = vdwg.mxu0
        %654 = vmatprep.subr.mxu0 0.0
        %655 = vmatpush1.msra.mxu0 0.0
        %656 = vmatprep.subr.mxu0 0.0
        %657 = vmatpush1.msra.mxu0 0.0
        %658 = vmatprep.subr.mxu0 0.0
        %659 = vmatpush1.msra.mxu0 0.0
        %660 = vmatprep.subr.mxu0 0.0
        %661 = vmatpush1.msra.mxu0 0.0
        %662 = vmatprep.subr.mxu0 0.0
        %663 = vmatpush1.msra.mxu0 0.0
        %664 = vmatprep.subr.mxu0 0.0
        %665 = vmatpush1.msra.mxu0 0.0
        %666 = vmatprep.subr.mxu0 0.0
        %667 = vmatpush1.msra.mxu0 0.0
        %668 = vmatprep.subr.mxu0 0.0
        %669 = vmatpush1.msra.mxu0 0.0
        %670 = vmatprep.subr.mxu0 0.0
        %671 = vmatpush1.msra.mxu0 0.0
        %672 = vmatprep.subr.mxu0 0.0
        %673 = vmatpush1.msra.mxu0 0.0
        %674 = vmatprep.subr.mxu0 0.0
        %675 = vmatpush1.msra.mxu0 0.0
        %676 = vmatprep.subr.mxu0 0.0
        %677 = vmatpush1.msra.mxu0 0.0
        %678 = vmatprep.subr.mxu0 0.0
        %679 = vmatpush1.msra.mxu0 0.0
        %680 = vmatprep.subr.mxu0 0.0
        %681 = vmatpush1.msra.mxu0 0.0
        %682 = vmatprep.subr.mxu0 0.0
        %683 = vmatpush1.msra.mxu0 0.0
        %684 = vmatprep.subr.mxu0 %v220
        %685 = vmatpush1.msra.mxu0 %v219
        %686 = vmatprep.subr.mxu0 0.0
        %687 = vmatpush2.msra.mxu0 0.0
        %688 = vmatprep.subr.mxu0 0.0
        %689 = vmatpush2.msra.mxu0 0.0
        %690 = vmatprep.subr.mxu0 0.0
        %691 = vmatpush2.msra.mxu0 0.0
        %692 = vmatprep.subr.mxu0 0.0
        %693 = vmatpush2.msra.mxu0 0.0
        %694 = vmatprep.subr.mxu0 0.0
        %695 = vmatpush2.msra.mxu0 0.0
        %696 = vmatprep.subr.mxu0 0.0
        %697 = vmatpush2.msra.mxu0 0.0
        %698 = vmatprep.subr.mxu0 0.0
        %699 = vmatpush2.msra.mxu0 0.0
        %700 = vmatprep.subr.mxu0 0.0
        %701 = vmatpush2.msra.mxu0 0.0
        %702 = vmatprep.subr.mxu0 0.0
        %703 = vmatpush2.msra.mxu0 0.0
        %704 = vmatprep.subr.mxu0 0.0
        %705 = vmatpush2.msra.mxu0 0.0
        %706 = vmatprep.subr.mxu0 0.0
        %707 = vmatpush2.msra.mxu0 0.0
        %708 = vmatprep.subr.mxu0 0.0
        %709 = vmatpush2.msra.mxu0 0.0
        %710 = vmatprep.subr.mxu0 0.0
        %711 = vmatpush2.msra.mxu0 0.0
        %712 = vmatprep.subr.mxu0 0.0
        %713 = vmatpush2.msra.mxu0 0.0
        %714 = vmatprep.subr.mxu0 0.0
        %715 = vmatpush2.msra.mxu0 0.0
        %716 = vmatprep.subr.mxu0 0.0
        %717 = vmatpush2.msra.mxu0 0.0
        %718 = vmatprep.mubr.f32.mxu0 0.0
        %719 = vmatmul.mubr.f32.gmra.mxu0 %v226
        %v720 = vpop.f32.mrf.mxu0
        %v721 = vadd.f32 0.0, %v720
        %v722 = vpop.f32.mrf.mxu0
        %v723 = vadd.f32 0.0, %v722
        %724 = vdwg.mxu0
        %725 = vmatprep.subr.mxu0 0.0
        %726 = vmatpush1.msra.mxu0 0.0
        %727 = vmatprep.subr.mxu0 0.0
        %728 = vmatpush1.msra.mxu0 0.0
        %729 = vmatprep.subr.mxu0 0.0
        %730 = vmatpush1.msra.mxu0 0.0
        %731 = vmatprep.subr.mxu0 0.0
        %732 = vmatpush1.msra.mxu0 0.0
        %733 = vmatprep.subr.mxu0 0.0
        %734 = vmatpush1.msra.mxu0 0.0
        %735 = vmatprep.subr.mxu0 0.0
        %736 = vmatpush1.msra.mxu0 0.0
        %737 = vmatprep.subr.mxu0 0.0
        %738 = vmatpush1.msra.mxu0 0.0
        %739 = vmatprep.subr.mxu0 0.0
        %740 = vmatpush1.msra.mxu0 0.0
        %741 = vmatprep.subr.mxu0 0.0
        %742 = vmatpush1.msra.mxu0 0.0
        %743 = vmatprep.subr.mxu0 0.0
        %744 = vmatpush1.msra.mxu0 0.0
        %745 = vmatprep.subr.mxu0 0.0
        %746 = vmatpush1.msra.mxu0 0.0
        %747 = vmatprep.subr.mxu0 0.0
        %748 = vmatpush1.msra.mxu0 0.0
        %749 = vmatprep.subr.mxu0 0.0
        %750 = vmatpush1.msra.mxu0 0.0
        %751 = vmatprep.subr.mxu0 0.0
        %752 = vmatpush1.msra.mxu0 0.0
        %753 = vmatprep.subr.mxu0 0.0
        %754 = vmatpush1.msra.mxu0 0.0
        %755 = vmatprep.subr.mxu0 %v222
        %756 = vmatpush1.msra.mxu0 %v221
        %757 = vmatprep.subr.mxu0 0.0
        %758 = vmatpush2.msra.mxu0 0.0
        %759 = vmatprep.subr.mxu0 0.0
        %760 = vmatpush2.msra.mxu0 0.0
        %761 = vmatprep.subr.mxu0 0.0
        %762 = vmatpush2.msra.mxu0 0.0
        %763 = vmatprep.subr.mxu0 0.0
        %764 = vmatpush2.msra.mxu0 0.0
        %765 = vmatprep.subr.mxu0 0.0
        %766 = vmatpush2.msra.mxu0 0.0
        %767 = vmatprep.subr.mxu0 0.0
        %768 = vmatpush2.msra.mxu0 0.0
        %769 = vmatprep.subr.mxu0 0.0
        %770 = vmatpush2.msra.mxu0 0.0
        %771 = vmatprep.subr.mxu0 0.0
        %772 = vmatpush2.msra.mxu0 0.0
        %773 = vmatprep.subr.mxu0 0.0
        %774 = vmatpush2.msra.mxu0 0.0
        %775 = vmatprep.subr.mxu0 0.0
        %776 = vmatpush2.msra.mxu0 0.0
        %777 = vmatprep.subr.mxu0 0.0
        %778 = vmatpush2.msra.mxu0 0.0
        %779 = vmatprep.subr.mxu0 0.0
        %780 = vmatpush2.msra.mxu0 0.0
        %781 = vmatprep.subr.mxu0 0.0
        %782 = vmatpush2.msra.mxu0 0.0
        %783 = vmatprep.subr.mxu0 0.0
        %784 = vmatpush2.msra.mxu0 0.0
        %785 = vmatprep.subr.mxu0 0.0
        %786 = vmatpush2.msra.mxu0 0.0
        %787 = vmatprep.subr.mxu0 0.0
        %788 = vmatpush2.msra.mxu0 0.0
        %789 = vmatprep.mubr.f32.mxu0 0.0
        %790 = vmatmul.mubr.f32.gmra.mxu0 %v226
        %v791 = vpop.f32.mrf.mxu0
        %v792 = vadd.f32 0.0, %v791
        %v793 = vpop.f32.mrf.mxu0
        %v794 = vadd.f32 0.0, %v793
        %795 = vdwg.mxu0
        %v796 = vadd.f32 %v207, %v295
        %v797 = vadd.f32 %v208, %v297
        %v798 = vadd.f32 %v209, %v366
        %v799 = vadd.f32 %v210, %v368
        %v800 = vadd.f32 %v211, %v437
        %v801 = vadd.f32 %v212, %v439
        %v802 = vadd.f32 %v213, %v508
        %v803 = vadd.f32 %v214, %v510
        %v804 = vadd.f32 %v215, %v579
        %v805 = vadd.f32 %v216, %v581
        %v806 = vadd.f32 %v217, %v650
        %v807 = vadd.f32 %v218, %v652
        %v808 = vadd.f32 %v219, %v721
        %v809 = vadd.f32 %v220, %v723
        %v810 = vadd.f32 %v221, %v792
        %v811 = vadd.f32 %v222, %v794
        %v812 = vld [vmem:[%s2] sm:$0xff]
        %814 = vset.pattern.permute.xlu0 0
        %815 = vperm.xlu0 %814, %v812
        %v816 = vpop.permute.xlu0 %815
        %v818 = vadd.f32 %v796, %v816
        %v819 = vadd.f32 %v797, %v816
        %v820 = vadd.f32 %v798, %v816
        %v821 = vadd.f32 %v799, %v816
        %v822 = vadd.f32 %v800, %v816
        %v823 = vadd.f32 %v801, %v816
        %v824 = vadd.f32 %v802, %v816
        %v825 = vadd.f32 %v803, %v816
        %v826 = vadd.f32 %v804, %v816
        %v827 = vadd.f32 %v805, %v816
        %v828 = vadd.f32 %v806, %v816
        %v829 = vadd.f32 %v807, %v816
        %v830 = vadd.f32 %v808, %v816
        %v831 = vadd.f32 %v809, %v816
        %v832 = vadd.f32 %v810, %v816
        %v833 = vadd.f32 %v811, %v816
        %834 = vst [vmem:[%s204] sm:$0xff] %v818
        %835 = vst [vmem:[%s204 + $0x8] sm:$0xff] %v819
        %836 = vst [vmem:[%s204 + $0x10] sm:$0xff] %v820
        %837 = vst [vmem:[%s204 + $0x18] sm:$0xff] %v821
        %838 = vst [vmem:[%s204 + $0x20] sm:$0xff] %v822
        %839 = vst [vmem:[%s204 + $0x28] sm:$0xff] %v823
        %840 = vst [vmem:[%s204 + $0x30] sm:$0xff] %v824
        %841 = vst [vmem:[%s204 + $0x38] sm:$0xff] %v825
        %842 = vst [vmem:[%s204 + $0x40] sm:$0xff] %v826
        %843 = vst [vmem:[%s204 + $0x48] sm:$0xff] %v827
        %844 = vst [vmem:[%s204 + $0x50] sm:$0xff] %v828
        %845 = vst [vmem:[%s204 + $0x58] sm:$0xff] %v829
        %846 = vst [vmem:[%s204 + $0x60] sm:$0xff] %v830
        %847 = vst [vmem:[%s204 + $0x68] sm:$0xff] %v831
        %848 = vst [vmem:[%s204 + $0x70] sm:$0xff] %v832
        %849 = vst [vmem:[%s204 + $0x78] sm:$0xff] %v833
        %s850 = sand.u32 %s112, 1
        %s851 = scalar_lea.sflag [#allocation4], %s850
        %s852 = sand.u32 %s112, 1
        %s853 = smul.addr %s852, 128
        %s854 = scalar_lea.vmem [#allocation5], %s853
        // Predicated region
        $region37: #{tpu_custom_call.1} parent=31 // pred_check
          %p855 = pneg %p122
        $region38: #{tpu_custom_call.1} parent=31 // pred_check_branch
          %857 = sbr.rel (%p855) target = $region40
        $region39: #{tpu_custom_call.1} parent=31 // pred_region
          %s858 = smul.u32 16, %s25
          %s860 = ssub.s32 2048, 2048
          %861 = vsyncadd %s851, %s860
          %s862 = smul.addr %s24, 32
          %s863 = sadd.s32 %s858, %s862
          %s864 = smul.addr %s863, 128
          %s865 = scalar_lea.hbm %s3, %s864
          %s867 = sshll.u32 %s854, 4
          %s868 = int_to_ptr.vmem [resolvable:$true] %s867
          %870 = dma.vmem_to_hbm [thread:$0]  %s868, 2048, %s865, %s851
        $region40: #{tpu_custom_call.1} parent=31 // pred_fallthru
          _
      $region32: #{tpu_custom_call.1} parent=5 // pred_fallthru
        _
      %p871 = scmp.le.s32.totalorder 2, %s15
      // Predicated region
      $region41: #{tpu_custom_call.1} parent=5 // pred_check
        %p872 = pneg %p871
      $region42: #{tpu_custom_call.1} parent=5 // pred_check_branch
        %874 = sbr.rel (%p872) target = $region44
      $region43: #{tpu_custom_call.1} parent=5 // pred_region
        %s875 = ssub.s32 %s15, 2
        // Predicated region
        $region45: #{tpu_custom_call.1} parent=43 // pred_check
          %p876 = pneg %p128
        $region46: #{tpu_custom_call.1} parent=43 // pred_check_branch
          %878 = sbr.rel (%p876) target = $region48
        $region47: #{tpu_custom_call.1} parent=43 // pred_region
          %s879 = sand.u32 %s113, 1
          %s880 = scalar_lea.sflag [#allocation4], %s879
          %s881 = sand.u32 %s113, 1
          %s882 = smul.addr %s881, 128
          %s883 = scalar_lea.vmem [#allocation5], %s882
          %884 = dma.done %s880, 2048
        $region48: #{tpu_custom_call.1} parent=43 // pred_fallthru
          _
      $region44: #{tpu_custom_call.1} parent=5 // pred_fallthru
        _
    $region6: #{tpu_custom_call.1} parent=1 // loop_footer
      %s19 = sadd.s32 1, %s15
    $region7: #{tpu_custom_call.1} parent=1 // loop_footer_branch
      %14 = sbr.rel target = $region3
    $region8: #{tpu_custom_call.1} parent=1 // loop_exit
      _
    %885 = vsyncpa [#allocation3], 1
    %s886 = scalar_lea.sflag [#allocation3], 1
    %887 = vsyncpa %s886, 1
    %888 = vsyncpa [#allocation4], 1
    %s889 = scalar_lea.sflag [#allocation4], 1
    %890 = vsyncpa %s889, 1

</llo_original>
